<compile_context>
chip_gen: v6e
topology: v6e:2x2x1
jax: 0.10.0
libtpu: 0.0.40
codegen_flags: <defaults>
</compile_context>

<pallas_src>
import functools

import jax
import jax.numpy as jnp
from jax.experimental import pallas as pl
from jax.experimental.pallas import tpu as pltpu

HIDDEN = 64        # hidden width of the PyTorch module
HIDDEN_PAD = 128   # lane-padded hidden width (columns >= HIDDEN are zero)


def _round_up(n, m):
    return ((n + m - 1) // m) * m


def _discriminator_kernel(x_ref, w_ref, b_ref, o_ref, *, d_pad):
    """Fused Linear->ReLU->Linear->ReLU->Linear->Sigmoid for one batch tile.

    x_ref : (TILE_B, d_pad)                  bf16
    w_ref : (d_pad + 2*HIDDEN_PAD, 128)      bf16  rows = [w1_pad; w2_pad; w3_pad]
    b_ref : (3, 128)                         f32   rows = [b1_pad; b2_pad; b3_pad]
    o_ref : (TILE_B, 128)                    f32   column 0 holds sigmoid(logits)
    """
    x = x_ref[...]                                               # bf16
    w1 = w_ref[0:d_pad, :]                                       # (d_pad, 128)
    w2 = w_ref[d_pad:d_pad + HIDDEN_PAD, :]                      # (128, 128)
    w3 = w_ref[d_pad + HIDDEN_PAD:d_pad + 2 * HIDDEN_PAD, :]     # (128, 128)

    b1 = b_ref[0:1, :]
    b2 = b_ref[1:2, :]
    b3 = b_ref[2:3, :]

    # bf16 operands on the MXU, f32 accumulation; elementwise work in f32.
    h1 = jnp.dot(x, w1, preferred_element_type=jnp.float32) + b1
    h1 = jnp.maximum(h1, 0.0)
    h2 = jnp.dot(h1.astype(jnp.bfloat16), w2, preferred_element_type=jnp.float32) + b2
    h2 = jnp.maximum(h2, 0.0)
    logits = jnp.dot(h2.astype(jnp.bfloat16), w3, preferred_element_type=jnp.float32) + b3
    # sigmoid: exp and approximate reciprocal both execute on the EUP slot.
    o_ref[...] = pl.reciprocal(1.0 + jnp.exp(-logits), approx=True)


def pack_params(params):
    """Pack 6 f32 params into 2 padded arrays (fewer DMAs, lane-dense layouts).

    Returns:
      w_packed: (d_pad + 2*HIDDEN_PAD, HIDDEN_PAD) bf16 — [w1; w2; w3] zero-padded.
      b_packed: (3, HIDDEN_PAD) f32 — [b1; b2; b3] zero-padded.
    """
    w1, b1 = params["w1"], params["b1"]   # (D, 64), (1, 64)
    w2, b2 = params["w2"], params["b2"]   # (64, 64), (1, 64)
    w3, b3 = params["w3"], params["b3"]   # (64, 1), (1, 1)
    d = w1.shape[0]
    d_pad = _round_up(d, 16)              # bf16 row tile is 16 sublanes

    w1_p = jnp.zeros((d_pad, HIDDEN_PAD), jnp.bfloat16).at[:d, :HIDDEN].set(
        w1.astype(jnp.bfloat16))
    w2_p = jnp.zeros((HIDDEN_PAD, HIDDEN_PAD), jnp.bfloat16).at[:HIDDEN, :HIDDEN].set(
        w2.astype(jnp.bfloat16))
    w3_p = jnp.zeros((HIDDEN_PAD, HIDDEN_PAD), jnp.bfloat16).at[:HIDDEN, :1].set(
        w3.astype(jnp.bfloat16))
    w_packed = jnp.concatenate([w1_p, w2_p, w3_p], axis=0)

    b_packed = (jnp.zeros((3, HIDDEN_PAD), jnp.float32)
                .at[0, :HIDDEN].set(b1.reshape(-1))
                .at[1, :HIDDEN].set(b2.reshape(-1))
                .at[2, :1].set(b3.reshape(-1)))
    return w_packed, b_packed


def discriminator_forward(x, w_packed, b_packed, *, tile_b=512):
    """x: (B, input_dim) f32 -> (B, 1) f32, matching PyTorch Discriminator.forward."""
    B, d = x.shape
    d_pad = w_packed.shape[0] - 2 * HIDDEN_PAD

    tile_b = min(tile_b, _round_up(B, 8))       # sublane-aligned batch tile
    b_pad = _round_up(B, tile_b)

    # Zero-pad batch and feature dims; pads feed zero weights so math is unchanged.
    x_p = jnp.zeros((b_pad, d_pad), jnp.bfloat16).at[:B, :d].set(x.astype(jnp.bfloat16))

    kernel = functools.partial(_discriminator_kernel, d_pad=d_pad)
    out = pl.pallas_call(
        kernel,
        out_shape=jax.ShapeDtypeStruct((b_pad, HIDDEN_PAD), jnp.float32),
        grid=(b_pad // tile_b,),
        in_specs=[
            pl.BlockSpec((tile_b, d_pad), lambda i: (i, 0)),     # streamed batch tiles
            pl.BlockSpec(w_packed.shape, lambda i: (0, 0)),      # resident weights
            pl.BlockSpec(b_packed.shape, lambda i: (0, 0)),      # resident biases
        ],
        out_specs=pl.BlockSpec((tile_b, HIDDEN_PAD), lambda i: (i, 0)),  # lane-dense
        compiler_params=pltpu.CompilerParams(
            dimension_semantics=("parallel",),     # megacore sharding on v7x
            vmem_limit_bytes=32 * 1024 * 1024,     # safe on v5e / v6e / v7x
        ),
    )(x_p, w_packed, b_packed)
    return out[:B, :1]


def init_params(key, input_dim, hidden=HIDDEN):
    """Deterministic init mirroring PyTorch Linear default (uniform +/- 1/sqrt(fan_in))."""
    ks = jax.random.split(key, 6)

    def linear(kw, kb, fan_in, fan_out):
        bound = 1.0 / jnp.sqrt(fan_in)
        w = jax.random.uniform(kw, (fan_in, fan_out), jnp.float32, -bound, bound)
        b = jax.random.uniform(kb, (1, fan_out), jnp.float32, -bound, bound)
        return w, b

    w1, b1 = linear(ks[0], ks[1], input_dim, hidden)
    w2, b2 = linear(ks[2], ks[3], hidden, hidden)
    w3, b3 = linear(ks[4], ks[5], hidden, 1)
    return {"w1": w1, "b1": b1, "w2": w2, "b2": b2, "w3": w3, "b3": b3}


if __name__ == "__main__":
    key = jax.random.PRNGKey(0)
    k_x, k_p = jax.random.split(key)

    # input_dim = 2 * state_dim; state_dim=16 -> input_dim=32
    B, input_dim = 64, 32
    x = jax.random.normal(k_x, (B, input_dim), jnp.float32)
    params = init_params(k_p, input_dim)
    w_packed, b_packed = pack_params(params)

    out = discriminator_forward(x, w_packed, b_packed)
    out = jax.block_until_ready(out)

    # Pure-JAX f32 reference of the original module.
    h1 = jnp.maximum(x @ params["w1"] + params["b1"], 0.0)
    h2 = jnp.maximum(h1 @ params["w2"] + params["b2"], 0.0)
    ref = jax.nn.sigmoid(h2 @ params["w3"] + params["b3"])

    assert out.shape == (B, 1)
    # bf16 matmul operands + approx reciprocal => loose-ish tolerance vs f32 ref.
    assert jnp.allclose(out, ref, atol=2e-2), "mismatch vs reference"

    print("KERNEL_OK")
</pallas_src>

<mosaic_0001>
module attributes {stable_mosaic.version = 11 : i64} {
  func.func @_discriminator_kernel(%arg0: i32, %arg1: memref<64x32xbf16, #tpu.memory_space<vmem>>, %arg2: memref<288x128xbf16, #tpu.memory_space<vmem>>, %arg3: memref<3x128xf32, #tpu.memory_space<vmem>>, %arg4: memref<64x128xf32, #tpu.memory_space<vmem>>) attributes {dimension_semantics = [#tpu.dimension_semantics<parallel>], iteration_bounds = array<i64: 1>, scalar_prefetch = 0 : i64, scratch_operands = 0 : i64, tpu.core_type = #tpu.core_type<tc>, window_params = [{transform_indices = @transform_0, window_bounds = array<i64: 64, 32>}, {pipeline_mode = #tpu.pipeline_mode<synchronous>, transform_indices = @transform_1, window_bounds = array<i64: 288, 128>}, {pipeline_mode = #tpu.pipeline_mode<synchronous>, transform_indices = @transform_2, window_bounds = array<i64: 3, 128>}, {transform_indices = @transform_3, window_bounds = array<i64: 64, 128>}]} {
    %c0 = arith.constant 0 : index
    %c0_0 = arith.constant 0 : index
    %0 = vector.load %arg1[%c0, %c0_0] : memref<64x32xbf16, #tpu.memory_space<vmem>>, vector<64x32xbf16>
    %c0_1 = arith.constant 0 : index
    %c0_2 = arith.constant 0 : index
    %1 = vector.load %arg2[%c0_1, %c0_2] : memref<288x128xbf16, #tpu.memory_space<vmem>>, vector<32x128xbf16>
    %c32 = arith.constant 32 : index
    %c0_3 = arith.constant 0 : index
    %2 = vector.load %arg2[%c32, %c0_3] : memref<288x128xbf16, #tpu.memory_space<vmem>>, vector<128x128xbf16>
    %c160 = arith.constant 160 : index
    %c0_4 = arith.constant 0 : index
    %3 = vector.load %arg2[%c160, %c0_4] : memref<288x128xbf16, #tpu.memory_space<vmem>>, vector<128x128xbf16>
    %c0_5 = arith.constant 0 : index
    %c0_6 = arith.constant 0 : index
    %4 = vector.load %arg3[%c0_5, %c0_6] : memref<3x128xf32, #tpu.memory_space<vmem>>, vector<1x128xf32>
    %c1 = arith.constant 1 : index
    %c0_7 = arith.constant 0 : index
    %5 = vector.load %arg3[%c1, %c0_7] : memref<3x128xf32, #tpu.memory_space<vmem>>, vector<1x128xf32>
    %c2 = arith.constant 2 : index
    %c0_8 = arith.constant 0 : index
    %6 = vector.load %arg3[%c2, %c0_8] : memref<3x128xf32, #tpu.memory_space<vmem>>, vector<1x128xf32>
    %cst = arith.constant dense<0.000000e+00> : vector<64x128xf32>
    %7 = tpu.matmul %0, %1, %cst {dimension_numbers = #tpu.dot_dimension_numbers<[1], [0], [0], [1], [0, 0, 1, 1], [], []>} : vector<64x32xbf16>, vector<32x128xbf16>, vector<64x128xf32> -> vector<64x128xf32>
    %8 = vector.broadcast %4 : vector<1x128xf32> to vector<64x128xf32>
    %9 = arith.addf %7, %8 : vector<64x128xf32>
    %cst_9 = arith.constant 0.000000e+00 : f32
    %10 = vector.broadcast %cst_9 : f32 to vector<64x128xf32>
    %11 = arith.maximumf %9, %10 : vector<64x128xf32>
    %12 = arith.truncf %11 : vector<64x128xf32> to vector<64x128xbf16>
    %cst_10 = arith.constant dense<0.000000e+00> : vector<64x128xf32>
    %13 = tpu.matmul %12, %2, %cst_10 {dimension_numbers = #tpu.dot_dimension_numbers<[1], [0], [0], [1], [0, 0, 1, 1], [], []>} : vector<64x128xbf16>, vector<128x128xbf16>, vector<64x128xf32> -> vector<64x128xf32>
    %14 = vector.broadcast %5 : vector<1x128xf32> to vector<64x128xf32>
    %15 = arith.addf %13, %14 : vector<64x128xf32>
    %cst_11 = arith.constant 0.000000e+00 : f32
    %16 = vector.broadcast %cst_11 : f32 to vector<64x128xf32>
    %17 = arith.maximumf %15, %16 : vector<64x128xf32>
    %18 = arith.truncf %17 : vector<64x128xf32> to vector<64x128xbf16>
    %cst_12 = arith.constant dense<0.000000e+00> : vector<64x128xf32>
    %19 = tpu.matmul %18, %3, %cst_12 {dimension_numbers = #tpu.dot_dimension_numbers<[1], [0], [0], [1], [0, 0, 1, 1], [], []>} : vector<64x128xbf16>, vector<128x128xbf16>, vector<64x128xf32> -> vector<64x128xf32>
    %20 = vector.broadcast %6 : vector<1x128xf32> to vector<64x128xf32>
    %21 = arith.addf %19, %20 : vector<64x128xf32>
    %cst_13 = arith.constant 0.000000e+00 : f32
    %22 = vector.broadcast %cst_13 : f32 to vector<64x128xf32>
    %23 = arith.subf %22, %21 : vector<64x128xf32>
    %24 = math.exp %23 : vector<64x128xf32>
    %cst_14 = arith.constant 1.000000e+00 : f32
    %25 = vector.broadcast %cst_14 : f32 to vector<64x128xf32>
    %26 = arith.addf %25, %24 : vector<64x128xf32>
    %27 = tpu.reciprocal %26 {approx = true} : vector<64x128xf32> -> vector<64x128xf32>
    %c0_15 = arith.constant 0 : index
    %c0_16 = arith.constant 0 : index
    %28 = vector.load %arg4[%c0_15, %c0_16] : memref<64x128xf32, #tpu.memory_space<vmem>>, vector<64x128xf32>
    tpu.vector_store %arg4[%c0_15, %c0_16], %27 {strides = array<i32>} : memref<64x128xf32, #tpu.memory_space<vmem>>, vector<64x128xf32>,
    return
  }
  func.func @transform_0(%arg0: i32) -> (i32, i32) {
    %c0_i32 = arith.constant 0 : i32
    %c0_i32_0 = arith.constant 0 : i32
    return %arg0, %c0_i32 : i32, i32
  }
  func.func @transform_1(%arg0: i32) -> (i32, i32) {
    %c0_i32 = arith.constant 0 : i32
    %c0_i32_0 = arith.constant 0 : i32
    %c0_i32_1 = arith.constant 0 : i32
    return %c0_i32, %c0_i32_0 : i32, i32
  }
  func.func @transform_2(%arg0: i32) -> (i32, i32) {
    %c0_i32 = arith.constant 0 : i32
    %c0_i32_0 = arith.constant 0 : i32
    %c0_i32_1 = arith.constant 0 : i32
    return %c0_i32, %c0_i32_0 : i32, i32
  }
  func.func @transform_3(%arg0: i32) -> (i32, i32) {
    %c0_i32 = arith.constant 0 : i32
    %c0_i32_0 = arith.constant 0 : i32
    return %arg0, %c0_i32 : i32, i32
  }
}

</mosaic_0001>

<llo_original>
// kernel: tpu_custom_call.1
$region0: #{tpu_custom_call.1}
  #allocation0 [shape = 'u32[]', space=smem, size = 0x4, offset = 0x4, fixed_abs, tag = 'smem constant byte address 0x4 - core index']
  #allocation1 [shape = 'u32[144,128]{1,0:T(1,128)}', space=vmem, size = 0x12000, scoped, tag = 'internal scratch']
  %s0 = inlined_call_operand.vmem [shape: bf16[64,32], index: 0, kind: input, shape index: {}]
  %s1 = inlined_call_operand.hbm [shape: bf16[288,128], index: 1, kind: input, shape index: {}]
  %s2 = inlined_call_operand.vmem [shape: f32[3,128], index: 2, kind: input, shape index: {}]
  %s3 = inlined_call_operand.hbm [shape: f32[64,128], index: 3, kind: output, shape index: {}]
  %s4 = sld [smem:[#allocation0]]
  $region26: #{tpu_custom_call.1} parent=0
    _
  %s6 = ssub.s32 1, %s4
  %s7 = scalar_select 0, %s6, %s4
  $region1: #{tpu_custom_call.1} parent=0
    #allocation2 [shape = 'u8[73728]{0}', space=vmem, size = 0x12000, scoped, tag = 'input window, operand 1, single buffered']
    #allocation3 [shape = 's32[1]{0}', space=sflag, size = 0x4, scoped, tag = 'scoped memory for tpu_custom_call.1']
    #allocation4 [shape = 's32[1]{0}', space=sflag, size = 0x4, scoped, tag = 'scoped memory for tpu_custom_call.1']
    #allocation5 [shape = 'u8[32768]{0}', space=vmem, size = 0x8000, scoped, tag = 'output window, operand 0, single buffered']
    %8 = vsyncpa [#allocation3], 0
    %9 = vsyncpa [#allocation4], 0
    // Predicated region
    $region2: #{tpu_custom_call.1} parent=1 // pred_check
      _
    $region3: #{tpu_custom_call.1} parent=1 // pred_check_branch
      %11 = sbr.rel (0) target = $region5
    $region4: #{tpu_custom_call.1} parent=1 // pred_region
      _
    $region5: #{tpu_custom_call.1} parent=1 // pred_fallthru
      _
    // Predicated region
    $region6: #{tpu_custom_call.1} parent=1 // pred_check
      _
    $region7: #{tpu_custom_call.1} parent=1 // pred_check_branch
      %13 = sbr.rel (0) target = $region9
    $region8: #{tpu_custom_call.1} parent=1 // pred_region
      %s15 = ssub.s32 2304, 2304
      %16 = vsyncadd [#allocation3], %s15
      %s17 = sshll.u32 [#allocation2], 4
      %s18 = int_to_ptr.vmem [resolvable:$true] %s17
      %23 = dma.hbm_to_vmem [thread:$0]  %s1, 2304, %s18, [#allocation3], 64, 64, 4
    $region9: #{tpu_custom_call.1} parent=1 // pred_fallthru
      _
    // Predicated region
    $region10: #{tpu_custom_call.1} parent=1 // pred_check
      _
    $region11: #{tpu_custom_call.1} parent=1 // pred_check_branch
      %25 = sbr.rel (0) target = $region13
    $region12: #{tpu_custom_call.1} parent=1 // pred_region
      _
    $region13: #{tpu_custom_call.1} parent=1 // pred_fallthru
      _
    // Predicated region
    $region14: #{tpu_custom_call.1} parent=1 // pred_check
      _
    $region15: #{tpu_custom_call.1} parent=1 // pred_check_branch
      %27 = sbr.rel (0) target = $region17
    $region16: #{tpu_custom_call.1} parent=1 // pred_region
      %28 = dma.done [#allocation3], 2304
    $region17: #{tpu_custom_call.1} parent=1 // pred_fallthru
      _
    %v30 = vld [vmem:[%s0] sm:$0xf]
    %v31 = vld [vmem:[%s0 + $0x4] sm:$0xf]
    %v32 = vld [vmem:[%s0 + $0x8] sm:$0xf]
    %v33 = vld [vmem:[%s0 + $0xc] sm:$0xf]
    %v34 = vld [vmem:[%s0 + $0x10] sm:$0xf]
    %v35 = vld [vmem:[%s0 + $0x14] sm:$0xf]
    %v36 = vld [vmem:[%s0 + $0x18] sm:$0xf]
    %v37 = vld [vmem:[%s0 + $0x1c] sm:$0xf]
    %v38 = vld [vmem:[#allocation2] sm:$0xf]
    %v39 = vld [vmem:[#allocation2 + $0x4] sm:$0xf]
    %v40 = vld [vmem:[#allocation2 + $0x8] sm:$0xf]
    %v41 = vld [vmem:[#allocation2 + $0xc] sm:$0xf]
    %v42 = vld [vmem:[#allocation2 + $0x10] sm:$0xf]
    %v43 = vld [vmem:[#allocation2 + $0x14] sm:$0xf]
    %v44 = vld [vmem:[#allocation2 + $0x18] sm:$0xf]
    %v45 = vld [vmem:[#allocation2 + $0x1c] sm:$0xf]
    %v46 = vld [vmem:[#allocation2 + $0x20] sm:$0xf]
    %v47 = vld [vmem:[#allocation2 + $0x24] sm:$0xf]
    %v48 = vld [vmem:[#allocation2 + $0x28] sm:$0xf]
    %v49 = vld [vmem:[#allocation2 + $0x2c] sm:$0xf]
    %v50 = vld [vmem:[#allocation2 + $0x30] sm:$0xf]
    %v51 = vld [vmem:[#allocation2 + $0x34] sm:$0xf]
    %v52 = vld [vmem:[#allocation2 + $0x38] sm:$0xf]
    %v53 = vld [vmem:[#allocation2 + $0x3c] sm:$0xf]
    %v54 = vld [vmem:[#allocation2 + $0x40] sm:$0xf]
    %v55 = vld [vmem:[#allocation2 + $0x44] sm:$0xf]
    %v56 = vld [vmem:[#allocation2 + $0x48] sm:$0xf]
    %v57 = vld [vmem:[#allocation2 + $0x4c] sm:$0xf]
    %v58 = vld [vmem:[#allocation2 + $0x50] sm:$0xf]
    %v59 = vld [vmem:[#allocation2 + $0x54] sm:$0xf]
    %v60 = vld [vmem:[#allocation2 + $0x58] sm:$0xf]
    %v61 = vld [vmem:[#allocation2 + $0x5c] sm:$0xf]
    %v62 = vld [vmem:[#allocation2 + $0x60] sm:$0xf]
    %v63 = vld [vmem:[#allocation2 + $0x64] sm:$0xf]
    %v64 = vld [vmem:[#allocation2 + $0x68] sm:$0xf]
    %v65 = vld [vmem:[#allocation2 + $0x6c] sm:$0xf]
    %v66 = vld [vmem:[#allocation2 + $0x70] sm:$0xf]
    %v67 = vld [vmem:[#allocation2 + $0x74] sm:$0xf]
    %v68 = vld [vmem:[#allocation2 + $0x78] sm:$0xf]
    %v69 = vld [vmem:[#allocation2 + $0x7c] sm:$0xf]
    %v70 = vld [vmem:[#allocation2 + $0x80] sm:$0xf]
    %v71 = vld [vmem:[#allocation2 + $0x84] sm:$0xf]
    %v72 = vld [vmem:[#allocation2 + $0x88] sm:$0xf]
    %v73 = vld [vmem:[#allocation2 + $0x8c] sm:$0xf]
    %v74 = vld [vmem:[%s2] sm:$0x1]
    %v75 = vld [vmem:[%s2 + $0x1] sm:$0x1]
    %v76 = vld [vmem:[%s2 + $0x2] sm:$0x1]
    %v77 = vlaneseq
    %v78 = vshrl.u32 %v77, 7
    %v79 = vsub.s32 0, %v78
    %v80 = vrot.slane %v74, %v79
    %v89 = vunpack.c.l.b16 %v30
    %v90 = vunpack.c.l.b16 %v31
    %v91 = vunpack.c.l.b16 %v32
    %v92 = vunpack.c.l.b16 %v33
    %v93 = vunpack.c.l.b16 %v34
    %v94 = vunpack.c.l.b16 %v35
    %v95 = vunpack.c.l.b16 %v36
    %v96 = vunpack.c.l.b16 %v37
    %v97 = vpack.c.b16 %v90, %v89
    %v98 = vpack.c.b16 %v92, %v91
    %v99 = vpack.c.b16 %v94, %v93
    %v100 = vpack.c.b16 %v96, %v95
    %v105 = vunpack.c.l.b16 %v38
    %v106 = vunpack.c.l.b16 %v39
    %v107 = vunpack.c.l.b16 %v40
    %v108 = vunpack.c.l.b16 %v41
    %v109 = vpack.c.b16 %v106, %v105
    %v110 = vpack.c.b16 %v108, %v107
    %vm113 = vcmask 261120
    %v115 = vsel %vm113, %v97, 0
    %v118 = vsel %vm113, %v98, 0
    %v121 = vsel %vm113, %v99, 0
    %v124 = vsel %vm113, %v100, 0
    %126 = vmatprep.subr.bf16.mxu0 0
    %127 = vmatpush1.bf16.msra.mxu0 0
    %128 = vmatprep.subr.bf16.mxu0 0
    %129 = vmatpush1.bf16.msra.mxu0 0
    %130 = vmatprep.subr.bf16.mxu0 0
    %131 = vmatpush1.bf16.msra.mxu0 0
    %132 = vmatprep.subr.bf16.mxu0 0
    %133 = vmatpush1.bf16.msra.mxu0 0
    %134 = vmatprep.subr.bf16.mxu0 0
    %135 = vmatpush1.bf16.msra.mxu0 0
    %136 = vmatprep.subr.bf16.mxu0 0
    %137 = vmatpush1.bf16.msra.mxu0 0
    %138 = vmatprep.subr.bf16.mxu0 0
    %139 = vmatpush1.bf16.msra.mxu0 %v110
    %140 = vmatprep.subr.bf16.mxu0 0
    %141 = vmatpush1.bf16.msra.mxu0 %v109
    %142 = vmatprep.subr.bf16.mxu0 0
    %143 = vmatpush2.bf16.msra.mxu0 0
    %144 = vmatprep.subr.bf16.mxu0 0
    %145 = vmatpush2.bf16.msra.mxu0 0
    %146 = vmatprep.subr.bf16.mxu0 0
    %147 = vmatpush2.bf16.msra.mxu0 0
    %148 = vmatprep.subr.bf16.mxu0 0
    %149 = vmatpush2.bf16.msra.mxu0 0
    %150 = vmatprep.subr.bf16.mxu0 0
    %151 = vmatpush2.bf16.msra.mxu0 0
    %152 = vmatprep.subr.bf16.mxu0 0
    %153 = vmatpush2.bf16.msra.mxu0 0
    %154 = vmatprep.subr.bf16.mxu0 0
    %155 = vmatpush2.bf16.msra.mxu0 0
    %156 = vmatprep.subr.bf16.mxu0 0
    %157 = vmatpush2.bf16.msra.mxu0 0
    %158 = vmatprep.mubr.bf16.mxu0 0
    %159 = vmatmul.mubr.bf16.gmra.mxu0 %v115
    %v160 = vpop.f32.mrf.mxu0
    %v161 = vadd.f32 %v80, %v160
    %v162 = vpop.f32.mrf.mxu0
    %v163 = vpop.f32.mrf.mxu0
    %v164 = vadd.f32 %v80, %v163
    %v165 = vpop.f32.mrf.mxu0
    %166 = vmatprep.mubr.bf16.mxu0 0
    %167 = vmatmul.mubr.bf16.gmra.mxu0 %v118
    %v168 = vpop.f32.mrf.mxu0
    %v169 = vadd.f32 %v80, %v168
    %v170 = vpop.f32.mrf.mxu0
    %v171 = vpop.f32.mrf.mxu0
    %v172 = vadd.f32 %v80, %v171
    %v173 = vpop.f32.mrf.mxu0
    %174 = vmatprep.mubr.bf16.mxu0 0
    %175 = vmatmul.mubr.bf16.gmra.mxu0 %v121
    %v176 = vpop.f32.mrf.mxu0
    %v177 = vadd.f32 %v80, %v176
    %v178 = vpop.f32.mrf.mxu0
    %v179 = vpop.f32.mrf.mxu0
    %v180 = vadd.f32 %v80, %v179
    %v181 = vpop.f32.mrf.mxu0
    %182 = vmatprep.mubr.bf16.mxu0 0
    %183 = vmatmul.mubr.bf16.gmra.mxu0 %v124
    %v184 = vpop.f32.mrf.mxu0
    %v185 = vadd.f32 %v80, %v184
    %v186 = vpop.f32.mrf.mxu0
    %v187 = vpop.f32.mrf.mxu0
    %v188 = vadd.f32 %v80, %v187
    %v189 = vpop.f32.mrf.mxu0
    %190 = vdwg.mxu0
    %v191 = vmax.f32 %v161, 0.0
    %v192 = vmax.f32 %v164, 0.0
    %v193 = vmax.f32 %v169, 0.0
    %v194 = vmax.f32 %v172, 0.0
    %v195 = vmax.f32 %v177, 0.0
    %v196 = vmax.f32 %v180, 0.0
    %v197 = vmax.f32 %v185, 0.0
    %v198 = vmax.f32 %v188, 0.0
    %v199 = vpack.c.bf16 %v192, %v191
    %v200 = vpack.c.bf16 %v194, %v193
    %v201 = vpack.c.bf16 %v196, %v195
    %v202 = vpack.c.bf16 %v198, %v197
    %v203 = vlaneseq
    %v204 = vshrl.u32 %v203, 7
    %v205 = vsub.s32 0, %v204
    %v206 = vrot.slane %v75, %v205
    %v223 = vunpack.c.l.b16 %v42
    %v224 = vunpack.c.l.b16 %v43
    %v225 = vunpack.c.l.b16 %v44
    %v226 = vunpack.c.l.b16 %v45
    %v227 = vunpack.c.l.b16 %v46
    %v228 = vunpack.c.l.b16 %v47
    %v229 = vunpack.c.l.b16 %v48
    %v230 = vunpack.c.l.b16 %v49
    %v231 = vunpack.c.l.b16 %v50
    %v232 = vunpack.c.l.b16 %v51
    %v233 = vunpack.c.l.b16 %v52
    %v234 = vunpack.c.l.b16 %v53
    %v235 = vunpack.c.l.b16 %v54
    %v236 = vunpack.c.l.b16 %v55
    %v237 = vunpack.c.l.b16 %v56
    %v238 = vunpack.c.l.b16 %v57
    %v239 = vpack.c.b16 %v224, %v223
    %v240 = vpack.c.b16 %v226, %v225
    %v241 = vpack.c.b16 %v228, %v227
    %v242 = vpack.c.b16 %v230, %v229
    %v243 = vpack.c.b16 %v232, %v231
    %v244 = vpack.c.b16 %v234, %v233
    %v245 = vpack.c.b16 %v236, %v235
    %v246 = vpack.c.b16 %v238, %v237
    %255 = vmatprep.subr.bf16.mxu0 0
    %256 = vmatpush1.bf16.msra.mxu0 %v246
    %257 = vmatprep.subr.bf16.mxu0 0
    %258 = vmatpush1.bf16.msra.mxu0 %v245
    %259 = vmatprep.subr.bf16.mxu0 0
    %260 = vmatpush1.bf16.msra.mxu0 %v244
    %261 = vmatprep.subr.bf16.mxu0 0
    %262 = vmatpush1.bf16.msra.mxu0 %v243
    %263 = vmatprep.subr.bf16.mxu0 0
    %264 = vmatpush1.bf16.msra.mxu0 %v242
    %265 = vmatprep.subr.bf16.mxu0 0
    %266 = vmatpush1.bf16.msra.mxu0 %v241
    %267 = vmatprep.subr.bf16.mxu0 0
    %268 = vmatpush1.bf16.msra.mxu0 %v240
    %269 = vmatprep.subr.bf16.mxu0 0
    %270 = vmatpush1.bf16.msra.mxu0 %v239
    %271 = vmatprep.subr.bf16.mxu0 0
    %272 = vmatpush2.bf16.msra.mxu0 0
    %273 = vmatprep.subr.bf16.mxu0 0
    %274 = vmatpush2.bf16.msra.mxu0 0
    %275 = vmatprep.subr.bf16.mxu0 0
    %276 = vmatpush2.bf16.msra.mxu0 0
    %277 = vmatprep.subr.bf16.mxu0 0
    %278 = vmatpush2.bf16.msra.mxu0 0
    %279 = vmatprep.subr.bf16.mxu0 0
    %280 = vmatpush2.bf16.msra.mxu0 0
    %281 = vmatprep.subr.bf16.mxu0 0
    %282 = vmatpush2.bf16.msra.mxu0 0
    %283 = vmatprep.subr.bf16.mxu0 0
    %284 = vmatpush2.bf16.msra.mxu0 0
    %285 = vmatprep.subr.bf16.mxu0 0
    %286 = vmatpush2.bf16.msra.mxu0 0
    %287 = vmatprep.mubr.bf16.mxu0 0
    %288 = vmatmul.mubr.bf16.gmra.mxu0 %v199
    %v289 = vpop.f32.mrf.mxu0
    %v290 = vadd.f32 %v206, %v289
    %v291 = vpop.f32.mrf.mxu0
    %v292 = vpop.f32.mrf.mxu0
    %v293 = vadd.f32 %v206, %v292
    %v294 = vpop.f32.mrf.mxu0
    %295 = vmatprep.mubr.bf16.mxu0 0
    %296 = vmatmul.mubr.bf16.gmra.mxu0 %v200
    %v297 = vpop.f32.mrf.mxu0
    %v298 = vadd.f32 %v206, %v297
    %v299 = vpop.f32.mrf.mxu0
    %v300 = vpop.f32.mrf.mxu0
    %v301 = vadd.f32 %v206, %v300
    %v302 = vpop.f32.mrf.mxu0
    %303 = vmatprep.mubr.bf16.mxu0 0
    %304 = vmatmul.mubr.bf16.gmra.mxu0 %v201
    %v305 = vpop.f32.mrf.mxu0
    %v306 = vadd.f32 %v206, %v305
    %v307 = vpop.f32.mrf.mxu0
    %v308 = vpop.f32.mrf.mxu0
    %v309 = vadd.f32 %v206, %v308
    %v310 = vpop.f32.mrf.mxu0
    %311 = vmatprep.mubr.bf16.mxu0 0
    %312 = vmatmul.mubr.bf16.gmra.mxu0 %v202
    %v313 = vpop.f32.mrf.mxu0
    %v314 = vadd.f32 %v206, %v313
    %v315 = vpop.f32.mrf.mxu0
    %v316 = vpop.f32.mrf.mxu0
    %v317 = vadd.f32 %v206, %v316
    %v318 = vpop.f32.mrf.mxu0
    %319 = vdwg.mxu0
    %v320 = vmax.f32 %v290, 0.0
    %v321 = vmax.f32 %v293, 0.0
    %v322 = vmax.f32 %v298, 0.0
    %v323 = vmax.f32 %v301, 0.0
    %v324 = vmax.f32 %v306, 0.0
    %v325 = vmax.f32 %v309, 0.0
    %v326 = vmax.f32 %v314, 0.0
    %v327 = vmax.f32 %v317, 0.0
    %v328 = vpack.c.bf16 %v321, %v320
    %v329 = vpack.c.bf16 %v323, %v322
    %v330 = vpack.c.bf16 %v325, %v324
    %v331 = vpack.c.bf16 %v327, %v326
    %v332 = vlaneseq
    %v333 = vshrl.u32 %v332, 7
    %v334 = vsub.s32 0, %v333
    %v335 = vrot.slane %v76, %v334
    %v352 = vunpack.c.l.b16 %v58
    %v353 = vunpack.c.l.b16 %v59
    %v354 = vunpack.c.l.b16 %v60
    %v355 = vunpack.c.l.b16 %v61
    %v356 = vunpack.c.l.b16 %v62
    %v357 = vunpack.c.l.b16 %v63
    %v358 = vunpack.c.l.b16 %v64
    %v359 = vunpack.c.l.b16 %v65
    %v360 = vunpack.c.l.b16 %v66
    %v361 = vunpack.c.l.b16 %v67
    %v362 = vunpack.c.l.b16 %v68
    %v363 = vunpack.c.l.b16 %v69
    %v364 = vunpack.c.l.b16 %v70
    %v365 = vunpack.c.l.b16 %v71
    %v366 = vunpack.c.l.b16 %v72
    %v367 = vunpack.c.l.b16 %v73
    %v368 = vpack.c.b16 %v353, %v352
    %v369 = vpack.c.b16 %v355, %v354
    %v370 = vpack.c.b16 %v357, %v356
    %v371 = vpack.c.b16 %v359, %v358
    %v372 = vpack.c.b16 %v361, %v360
    %v373 = vpack.c.b16 %v363, %v362
    %v374 = vpack.c.b16 %v365, %v364
    %v375 = vpack.c.b16 %v367, %v366
    %384 = vmatprep.subr.bf16.mxu0 0
    %385 = vmatpush1.bf16.msra.mxu0 %v375
    %386 = vmatprep.subr.bf16.mxu0 0
    %387 = vmatpush1.bf16.msra.mxu0 %v374
    %388 = vmatprep.subr.bf16.mxu0 0
    %389 = vmatpush1.bf16.msra.mxu0 %v373
    %390 = vmatprep.subr.bf16.mxu0 0
    %391 = vmatpush1.bf16.msra.mxu0 %v372
    %392 = vmatprep.subr.bf16.mxu0 0
    %393 = vmatpush1.bf16.msra.mxu0 %v371
    %394 = vmatprep.subr.bf16.mxu0 0
    %395 = vmatpush1.bf16.msra.mxu0 %v370
    %396 = vmatprep.subr.bf16.mxu0 0
    %397 = vmatpush1.bf16.msra.mxu0 %v369
    %398 = vmatprep.subr.bf16.mxu0 0
    %399 = vmatpush1.bf16.msra.mxu0 %v368
    %400 = vmatprep.subr.bf16.mxu0 0
    %401 = vmatpush2.bf16.msra.mxu0 0
    %402 = vmatprep.subr.bf16.mxu0 0
    %403 = vmatpush2.bf16.msra.mxu0 0
    %404 = vmatprep.subr.bf16.mxu0 0
    %405 = vmatpush2.bf16.msra.mxu0 0
    %406 = vmatprep.subr.bf16.mxu0 0
    %407 = vmatpush2.bf16.msra.mxu0 0
    %408 = vmatprep.subr.bf16.mxu0 0
    %409 = vmatpush2.bf16.msra.mxu0 0
    %410 = vmatprep.subr.bf16.mxu0 0
    %411 = vmatpush2.bf16.msra.mxu0 0
    %412 = vmatprep.subr.bf16.mxu0 0
    %413 = vmatpush2.bf16.msra.mxu0 0
    %414 = vmatprep.subr.bf16.mxu0 0
    %415 = vmatpush2.bf16.msra.mxu0 0
    %416 = vmatprep.mubr.bf16.mxu0 0
    %417 = vmatmul.mubr.bf16.gmra.mxu0 %v328
    %v418 = vpop.f32.mrf.mxu0
    %v419 = vadd.f32 %v335, %v418
    %v420 = vpop.f32.mrf.mxu0
    %v421 = vpop.f32.mrf.mxu0
    %v422 = vadd.f32 %v335, %v421
    %v423 = vpop.f32.mrf.mxu0
    %424 = vmatprep.mubr.bf16.mxu0 0
    %425 = vmatmul.mubr.bf16.gmra.mxu0 %v329
    %v426 = vpop.f32.mrf.mxu0
    %v427 = vadd.f32 %v335, %v426
    %v428 = vpop.f32.mrf.mxu0
    %v429 = vpop.f32.mrf.mxu0
    %v430 = vadd.f32 %v335, %v429
    %v431 = vpop.f32.mrf.mxu0
    %432 = vmatprep.mubr.bf16.mxu0 0
    %433 = vmatmul.mubr.bf16.gmra.mxu0 %v330
    %v434 = vpop.f32.mrf.mxu0
    %v435 = vadd.f32 %v335, %v434
    %v436 = vpop.f32.mrf.mxu0
    %v437 = vpop.f32.mrf.mxu0
    %v438 = vadd.f32 %v335, %v437
    %v439 = vpop.f32.mrf.mxu0
    %440 = vmatprep.mubr.bf16.mxu0 0
    %441 = vmatmul.mubr.bf16.gmra.mxu0 %v331
    %v442 = vpop.f32.mrf.mxu0
    %v443 = vadd.f32 %v335, %v442
    %v444 = vpop.f32.mrf.mxu0
    %v445 = vpop.f32.mrf.mxu0
    %v446 = vadd.f32 %v335, %v445
    %v447 = vpop.f32.mrf.mxu0
    %448 = vdwg.mxu0
    %v449 = vsub.f32 0.0, %v419
    %v450 = vsub.f32 0.0, %v422
    %v451 = vsub.f32 0.0, %v427
    %v452 = vsub.f32 0.0, %v430
    %v453 = vsub.f32 0.0, %v435
    %v454 = vsub.f32 0.0, %v438
    %v455 = vsub.f32 0.0, %v443
    %v456 = vsub.f32 0.0, %v446
    %v457 = vmul.f32 %v449, 1.442695
    %v458 = vpow.pop %v457
    %v459 = vmul.f32 %v450, 1.442695
    %v460 = vpow.pop %v459
    %v461 = vmul.f32 %v451, 1.442695
    %v462 = vpow.pop %v461
    %v463 = vmul.f32 %v452, 1.442695
    %v464 = vpow.pop %v463
    %v465 = vmul.f32 %v453, 1.442695
    %v466 = vpow.pop %v465
    %v467 = vmul.f32 %v454, 1.442695
    %v468 = vpow.pop %v467
    %v469 = vmul.f32 %v455, 1.442695
    %v470 = vpow.pop %v469
    %v471 = vmul.f32 %v456, 1.442695
    %v472 = vpow.pop %v471
    %v473 = vadd.f32 %v458, 1.0
    %v474 = vadd.f32 %v460, 1.0
    %v475 = vadd.f32 %v462, 1.0
    %v476 = vadd.f32 %v464, 1.0
    %v477 = vadd.f32 %v466, 1.0
    %v478 = vadd.f32 %v468, 1.0
    %v479 = vadd.f32 %v470, 1.0
    %v480 = vadd.f32 %v472, 1.0
    %v481 = vrcp.pop %v473
    %v482 = vrcp.pop %v474
    %v483 = vrcp.pop %v475
    %v484 = vrcp.pop %v476
    %v485 = vrcp.pop %v477
    %v486 = vrcp.pop %v478
    %v487 = vrcp.pop %v479
    %v488 = vrcp.pop %v480
    %489 = vst [vmem:[#allocation5] sm:$0xff] %v481
    %490 = vst [vmem:[#allocation5 + $0x8] sm:$0xff] %v482
    %491 = vst [vmem:[#allocation5 + $0x10] sm:$0xff] %v483
    %492 = vst [vmem:[#allocation5 + $0x18] sm:$0xff] %v484
    %493 = vst [vmem:[#allocation5 + $0x20] sm:$0xff] %v485
    %494 = vst [vmem:[#allocation5 + $0x28] sm:$0xff] %v486
    %495 = vst [vmem:[#allocation5 + $0x30] sm:$0xff] %v487
    %496 = vst [vmem:[#allocation5 + $0x38] sm:$0xff] %v488
    // Predicated region
    $region18: #{tpu_custom_call.1} parent=1 // pred_check
      _
    $region19: #{tpu_custom_call.1} parent=1 // pred_check_branch
      %498 = sbr.rel (0) target = $region21
    $region20: #{tpu_custom_call.1} parent=1 // pred_region
      %s500 = ssub.s32 1024, 1024
      %501 = vsyncadd [#allocation4], %s500
      %s502 = sshll.u32 [#allocation5], 4
      %s503 = int_to_ptr.vmem [resolvable:$true] %s502
      %508 = dma.vmem_to_hbm [thread:$0]  %s503, 1024, %s3, [#allocation4], 128, 128, 8
    $region21: #{tpu_custom_call.1} parent=1 // pred_fallthru
      _
    // Predicated region
    $region22: #{tpu_custom_call.1} parent=1 // pred_check
      _
    $region23: #{tpu_custom_call.1} parent=1 // pred_check_branch
      %510 = sbr.rel (0) target = $region25
    $region24: #{tpu_custom_call.1} parent=1 // pred_region
      %511 = dma.done [#allocation4], 1024
    $region25: #{tpu_custom_call.1} parent=1 // pred_fallthru
      _
    %512 = vsyncpa [#allocation3], 1
    %513 = vsyncpa [#allocation4], 1

</llo_original>
